<compile_context>
chip_gen: v7x
topology: tpu7x:2x2x1
jax: 0.10.0
libtpu: 0.0.40
codegen_flags: <defaults>
</compile_context>

<pallas_src>
import numpy as np
import jax
import jax.numpy as jnp
from jax.experimental import pallas as pl
from jax.experimental.pallas import tpu as pltpu


# ----------------------------------------------------------------------------
# generate_anchors: minimal deterministic re-implementation (only used to honor
# __init__; the anchor arithmetic of proposal_layer is not exercised by forward).
# ----------------------------------------------------------------------------
def generate_anchors(scales, ratios, base_size=8):
    anchors = []
    for r in ratios:
        w0 = base_size * np.sqrt(1.0 / r)
        h0 = base_size * np.sqrt(r)
        for s in scales:
            w, h = w0 * s, h0 * s
            anchors.append([-w / 2.0, -h / 2.0, w / 2.0, h / 2.0])
    return np.asarray(anchors, dtype=np.float32)


# ----------------------------------------------------------------------------
# small host-side helpers
# ----------------------------------------------------------------------------
def _cdiv(a, b):
    return -(-a // b)


def _round_up(x, m):
    return ((x + m - 1) // m) * m


def _row_tiles(rows, max_tile=256):
    """Return (padded_rows, tile_rows): tile_rows is a multiple of 8 and divides padded_rows."""
    r8 = max(_round_up(rows, 8), 8)
    if r8 <= max_tile:
        return r8, r8
    return _round_up(r8, max_tile), max_tile


# ----------------------------------------------------------------------------
# Pallas kernels
# ----------------------------------------------------------------------------
def _make_mask_iou_kernel(n_rows, n_cols):
    """soft_margin_loss + iou_measure, fully reduced in-kernel.

    Output: (1, 128) lane-dense slab; lanes 0..3 = [loss, iou_mean, iou>0.5, iou>0.7].
    Padded rows/cols are filled (pred=-1e4, label=-1) so they contribute exactly 0.
    """
    inv_nd = 1.0 / float(n_rows * n_cols)
    inv_n = 1.0 / float(n_rows)

    def kernel(p_ref, t_ref, out_ref, acc_ref):
        i = pl.program_id(0)

        @pl.when(i == 0)
        def _init():
            acc_ref[...] = jnp.zeros_like(acc_ref)

        p = p_ref[...].astype(jnp.float32)          # (TN, 896)
        t = t_ref[...].astype(jnp.float32)
        sm = jax.nn.softplus(-t * p)                # soft_margin_loss elements
        pred_pos = p >= 0.0                         # pred.ge(0)
        lab_pos = t == 1.0                          # label.eq(1)
        ix = jnp.sum(jnp.logical_and(pred_pos, lab_pos).astype(jnp.float32),
                     axis=-1, keepdims=True)        # (TN, 1)
        un = jnp.sum(jnp.logical_or(pred_pos, lab_pos).astype(jnp.float32),
                     axis=-1, keepdims=True)
        iou = ix / jnp.where(un > 0.0, un, 1.0)     # padded rows -> 0

        sm_s = jnp.sum(sm, keepdims=True)                                   # (1,1)
        iou_s = jnp.sum(iou, keepdims=True)
        c5 = jnp.sum((iou > 0.5).astype(jnp.float32), keepdims=True)
        c7 = jnp.sum((iou > 0.7).astype(jnp.float32), keepdims=True)

        lane = jax.lax.broadcasted_iota(jnp.int32, acc_ref.shape, 1)        # (1,128)
        acc_ref[...] += (jnp.where(lane == 0, sm_s, 0.0)
                         + jnp.where(lane == 1, iou_s, 0.0)
                         + jnp.where(lane == 2, c5, 0.0)
                         + jnp.where(lane == 3, c7, 0.0))

        @pl.when(i == pl.num_programs(0) - 1)
        def _fini():
            scale = jnp.where(lane == 0, inv_nd, inv_n).astype(jnp.float32)
            out_ref[...] = acc_ref[...] * scale

    return kernel


def _cls_loss_kernel(x0_ref, x1_ref, lab_ref, out_ref, acc_ref):
    """Fused 2-class log-softmax + masked NLL (select_cross_entropy_loss).

    Accumulates [sum_pos_nll, count_pos, sum_neg_nll, count_neg] in lanes 0..3 of
    a (1,128) VMEM scratch; the final 0.5*pos+0.5*neg combine happens in the last
    grid step.  Output: (1,128) slab with the loss broadcast across lanes.
    """
    i = pl.program_id(0)

    @pl.when(i == 0)
    def _init():
        acc_ref[...] = jnp.zeros_like(acc_ref)

    x0 = x0_ref[...].astype(jnp.float32)            # (TR, 128)
    x1 = x1_ref[...].astype(jnp.float32)
    lab = lab_ref[...]
    m = jnp.maximum(x0, x1)
    lse = m + jnp.log(jnp.exp(x0 - m) + jnp.exp(x1 - m))
    lp0 = x0 - lse
    lp1 = x1 - lse
    pos = lab == 1.0
    neg = lab == 0.0                                 # padded labels are -1 -> ignored

    sp = jnp.sum(jnp.where(pos, -lp1, 0.0), keepdims=True)      # (1,1)
    cp = jnp.sum(pos.astype(jnp.float32), keepdims=True)
    sn = jnp.sum(jnp.where(neg, -lp0, 0.0), keepdims=True)
    cn = jnp.sum(neg.astype(jnp.float32), keepdims=True)

    lane = jax.lax.broadcasted_iota(jnp.int32, acc_ref.shape, 1)
    acc_ref[...] += (jnp.where(lane == 0, sp, 0.0)
                     + jnp.where(lane == 1, cp, 0.0)
                     + jnp.where(lane == 2, sn, 0.0)
                     + jnp.where(lane == 3, cn, 0.0))

    @pl.when(i == pl.num_programs(0) - 1)
    def _fini():
        acc = acc_ref[...]
        sp_t = jnp.sum(jnp.where(lane == 0, acc, 0.0), keepdims=True)
        cp_t = jnp.sum(jnp.where(lane == 1, acc, 0.0), keepdims=True)
        sn_t = jnp.sum(jnp.where(lane == 2, acc, 0.0), keepdims=True)
        cn_t = jnp.sum(jnp.where(lane == 3, acc, 0.0), keepdims=True)
        # "if select.nelement() == 0: return pred.sum() * 0.0"
        loss_pos = jnp.where(cp_t > 0.0, sp_t / jnp.maximum(cp_t, 1.0), 0.0)
        loss_neg = jnp.where(cn_t > 0.0, sn_t / jnp.maximum(cn_t, 1.0), 0.0)
        loss = 0.5 * loss_pos + 0.5 * loss_neg                    # (1,1)
        out_ref[...] = jnp.broadcast_to(loss, out_ref.shape)


def _make_wl1_kernel(batch):
    """weight_l1_loss: |p - l| summed over the 4 coords, weighted, summed, / batch."""
    inv_b = 1.0 / float(batch)

    def kernel(p_ref, l_ref, w_ref, out_ref, acc_ref):
        i = pl.program_id(0)

        @pl.when(i == 0)
        def _init():
            acc_ref[...] = jnp.zeros_like(acc_ref)

        p = p_ref[...].astype(jnp.float32)           # (4, TR, 128)
        l = l_ref[...].astype(jnp.float32)
        w = w_ref[...].astype(jnp.float32)           # (TR, 128)
        diff = (jnp.abs(p[0] - l[0]) + jnp.abs(p[1] - l[1])
                + jnp.abs(p[2] - l[2]) + jnp.abs(p[3] - l[3]))    # (TR, 128)
        acc_ref[...] += jnp.sum(diff * w, axis=0, keepdims=True)  # (1, 128) lane partials

        @pl.when(i == pl.num_programs(0) - 1)
        def _fini():
            total = jnp.sum(acc_ref[...], keepdims=True)          # (1,1)
            out_ref[...] = jnp.broadcast_to(total * inv_b, out_ref.shape)

    return kernel


def _logsoftmax2_kernel(x0_ref, x1_ref, y0_ref, y1_ref):
    """Standalone 2-class log-softmax (SiamMask.softmax); not on the forward loss path."""
    x0 = x0_ref[...].astype(jnp.float32)
    x1 = x1_ref[...].astype(jnp.float32)
    m = jnp.maximum(x0, x1)
    lse = m + jnp.log(jnp.exp(x0 - m) + jnp.exp(x1 - m))
    y0_ref[...] = (x0 - lse).astype(y0_ref.dtype)
    y1_ref[...] = (x1 - lse).astype(y1_ref.dtype)


# ----------------------------------------------------------------------------
# Wrappers (plain-JAX layout glue around the kernels)
# ----------------------------------------------------------------------------
def mask_loss_and_iou(target_mask, pre_mask):
    """= (F.soft_margin_loss(pre_mask, target_mask), *iou_measure(pre_mask, target_mask))."""
    pred = pre_mask.reshape(-1, 28 * 28)
    lab = target_mask.reshape(-1, 28 * 28)
    N, D = pred.shape
    D_pad = _round_up(D, 128)                       # 784 -> 896 (clean lane tiling)
    N_pad, TN = _row_tiles(N)
    # Pad values chosen so padded elements contribute exactly zero to every reduction:
    # pred=-1e4 (pred_pos False, softplus(-t*p)=softplus(-1e4)=0), label=-1 (lab_pos False).
    pred_p = jnp.pad(pred, ((0, N_pad - N), (0, D_pad - D)), constant_values=-1e4)
    lab_p = jnp.pad(lab, ((0, N_pad - N), (0, D_pad - D)), constant_values=-1.0)

    out = pl.pallas_call(
        _make_mask_iou_kernel(N, D),
        out_shape=jax.ShapeDtypeStruct((1, 128), jnp.float32),
        grid=(N_pad // TN,),
        in_specs=[
            pl.BlockSpec((TN, D_pad), lambda i: (i, 0)),
            pl.BlockSpec((TN, D_pad), lambda i: (i, 0)),
        ],
        out_specs=pl.BlockSpec((1, 128), lambda i: (0, 0)),
        scratch_shapes=[pltpu.VMEM((1, 128), jnp.float32)],
        compiler_params=pltpu.CompilerParams(dimension_semantics=("arbitrary",)),
    )(pred_p, lab_p)
    return out[0, 0], out[0, 1], out[0, 2], out[0, 3]


def rpn_cls_loss(rpn_pred_cls, label_cls):
    """Fused SiamMask.softmax + select_cross_entropy_loss."""
    b, a2, h, w = rpn_pred_cls.shape
    k = a2 // 2
    x0 = rpn_pred_cls[:, :k].reshape(-1)            # class-0 logits, (b,k,h,w) order
    x1 = rpn_pred_cls[:, k:].reshape(-1)            # class-1 logits
    lab = label_cls.reshape(-1).astype(jnp.float32)
    M = lab.shape[0]
    R = _cdiv(M, 128)
    R_pad, TR = _row_tiles(R)
    Mp = R_pad * 128
    x0 = jnp.pad(x0, (0, Mp - M)).reshape(R_pad, 128)
    x1 = jnp.pad(x1, (0, Mp - M)).reshape(R_pad, 128)
    lab = jnp.pad(lab, (0, Mp - M), constant_values=-1.0).reshape(R_pad, 128)

    out = pl.pallas_call(
        _cls_loss_kernel,
        out_shape=jax.ShapeDtypeStruct((1, 128), jnp.float32),
        grid=(R_pad // TR,),
        in_specs=[pl.BlockSpec((TR, 128), lambda i: (i, 0))] * 3,
        out_specs=pl.BlockSpec((1, 128), lambda i: (0, 0)),
        scratch_shapes=[pltpu.VMEM((1, 128), jnp.float32)],
        compiler_params=pltpu.CompilerParams(dimension_semantics=("arbitrary",)),
    )(x0, x1, lab)
    return out[0, 0]


def weight_l1_loss(pred_loc, label_loc, loss_weight):
    """pred_loc [b,4k,h,w], label_loc [b,4,k,h,w] (or [b,4k,h,w]), loss_weight [b,k,h,w]."""
    b = pred_loc.shape[0]
    k = loss_weight.shape[1]
    h, w = pred_loc.shape[2], pred_loc.shape[3]
    p5 = pred_loc.reshape(b, 4, k, h, w)
    l5 = label_loc.reshape(b, 4, k, h, w)
    P = jnp.transpose(p5, (1, 0, 2, 3, 4)).reshape(4, -1)   # (4, M)
    L = jnp.transpose(l5, (1, 0, 2, 3, 4)).reshape(4, -1)
    W = loss_weight.reshape(-1)                             # (M,)
    M = W.shape[0]
    R = _cdiv(M, 128)
    R_pad, TR = _row_tiles(R)
    Mp = R_pad * 128
    P = jnp.pad(P, ((0, 0), (0, Mp - M))).reshape(4, R_pad, 128)
    L = jnp.pad(L, ((0, 0), (0, Mp - M))).reshape(4, R_pad, 128)
    Wp = jnp.pad(W, (0, Mp - M)).reshape(R_pad, 128)        # zero weight on padding

    out = pl.pallas_call(
        _make_wl1_kernel(b),
        out_shape=jax.ShapeDtypeStruct((1, 128), jnp.float32),
        grid=(R_pad // TR,),
        in_specs=[
            pl.BlockSpec((4, TR, 128), lambda i: (0, i, 0)),
            pl.BlockSpec((4, TR, 128), lambda i: (0, i, 0)),
            pl.BlockSpec((TR, 128), lambda i: (i, 0)),
        ],
        out_specs=pl.BlockSpec((1, 128), lambda i: (0, 0)),
        scratch_shapes=[pltpu.VMEM((1, 128), jnp.float32)],
        compiler_params=pltpu.CompilerParams(dimension_semantics=("arbitrary",)),
    )(P, L, Wp)
    return out[0, 0]


def siammask_softmax(cls):
    """SiamMask.softmax: cls (b, 2k, h, w) -> log-probs (b, k, h, w, 2).

    Kept for API parity; the forward loss path uses the fused rpn_cls_loss instead.
    """
    b, a2, h, w = cls.shape
    k = a2 // 2
    x0 = cls[:, :k].reshape(-1)
    x1 = cls[:, k:].reshape(-1)
    M = x0.shape[0]
    R = _cdiv(M, 128)
    R_pad, TR = _row_tiles(R)
    Mp = R_pad * 128
    x0p = jnp.pad(x0, (0, Mp - M)).reshape(R_pad, 128)
    x1p = jnp.pad(x1, (0, Mp - M)).reshape(R_pad, 128)

    y0, y1 = pl.pallas_call(
        _logsoftmax2_kernel,
        out_shape=(jax.ShapeDtypeStruct((R_pad, 128), jnp.float32),
                   jax.ShapeDtypeStruct((R_pad, 128), jnp.float32)),
        grid=(R_pad // TR,),
        in_specs=[pl.BlockSpec((TR, 128), lambda i: (i, 0))] * 2,
        out_specs=(pl.BlockSpec((TR, 128), lambda i: (i, 0)),
                   pl.BlockSpec((TR, 128), lambda i: (i, 0))),
        compiler_params=pltpu.CompilerParams(dimension_semantics=("parallel",)),
    )(x0p, x1p)
    y0 = y0.reshape(-1)[:M].reshape(b, k, h, w)
    y1 = y1.reshape(-1)[:M].reshape(b, k, h, w)
    return jnp.stack([y0, y1], axis=-1)


# ----------------------------------------------------------------------------
# SiamMask module wrapper
# ----------------------------------------------------------------------------
class SiamMaskPallas:
    def __init__(self, proposals=100, anchors=None, o_sz=127, g_sz=127):
        anchors = anchors or {"ratios": [0.33, 0.5, 1, 2, 3], "scales": [8]}
        self.anchors = anchors
        self.anchor_num = len(anchors["ratios"]) * len(anchors["scales"])
        self._anchors = jnp.asarray(
            generate_anchors(np.array([8.0]), np.array([0.33, 0.5, 1, 2, 3]))
        )
        self.o_sz = o_sz
        self.g_sz = g_sz
        self.numP = proposals
        self.training = True
        # TODO(synk): self.features / self.rpn_model / self.mask_model / self.refine are
        # None (undefined) in the reference module; the backbone/RPN/mask-head and the
        # ragged index_select paths (proposal_layer, detection_target_layer,
        # select_mask_logistic_loss upsample+unfold) cannot be reproduced, so forward()
        # consumes the head outputs directly and runs the defined losses/metrics.

    def softmax(self, cls):
        return siammask_softmax(cls)

    def mask_loss_and_iou(self, target_mask, pre_mask):
        return mask_loss_and_iou(target_mask, pre_mask)

    def forward(self, inputs):
        rpn_pred_cls = inputs["rpn_pred_cls"]      # (b, 2k, h, w)
        rpn_pred_loc = inputs["rpn_pred_loc"]      # (b, 4k, h, w)
        mrcnn_mask = inputs["mrcnn_mask"]          # (Np, 28*28)
        target_mask = inputs["target_mask"]        # (Np, 28*28)

        outputs = {}
        outputs["predict"] = [rpn_pred_loc, rpn_pred_cls, mrcnn_mask]
        if self.training:
            loss, iou_m, iou_5, iou_7 = self.mask_loss_and_iou(target_mask, mrcnn_mask)
            outputs["losses"] = [loss]
            outputs["accuracy"] = [iou_m, iou_5, iou_7]
            # _add_rpn_loss components that are fully defined by the module
            # (log-softmax is fused into the cls loss kernel):
            outputs["rpn_loss_cls"] = rpn_cls_loss(rpn_pred_cls, inputs["label_cls"])
            outputs["rpn_loss_loc"] = weight_l1_loss(
                rpn_pred_loc, inputs["label_loc"], inputs["label_loc_weight"]
            )
        return outputs


# ----------------------------------------------------------------------------
# main
# ----------------------------------------------------------------------------
if __name__ == "__main__":
    key = jax.random.PRNGKey(0)
    b, k, h, w = 2, 5, 16, 16          # anchor_num = 5 (ratios) * 1 (scales)
    Np = 16                            # number of (proposal) mask rows, 28*28 each

    ks = jax.random.split(key, 8)
    rpn_pred_cls = jax.random.normal(ks[0], (b, 2 * k, h, w), jnp.float32)
    rpn_pred_loc = jax.random.normal(ks[1], (b, 4 * k, h, w), jnp.float32)
    label_cls = jax.random.randint(ks[2], (b, k, h, w), -1, 2).astype(jnp.float32)
    label_loc = jax.random.normal(ks[3], (b, 4, k, h, w), jnp.float32)
    label_loc_weight = jax.random.uniform(ks[4], (b, k, h, w), jnp.float32)
    mrcnn_mask = jax.random.normal(ks[5], (Np, 28 * 28), jnp.float32)
    target_mask = jax.random.bernoulli(ks[6], 0.5, (Np, 28 * 28)).astype(jnp.float32)

    model = SiamMaskPallas(proposals=100)
    inputs = {
        "rpn_pred_cls": rpn_pred_cls,
        "rpn_pred_loc": rpn_pred_loc,
        "label_cls": label_cls,
        "label_loc": label_loc,
        "label_loc_weight": label_loc_weight,
        "mrcnn_mask": mrcnn_mask,
        "target_mask": target_mask,
    }
    outputs = model.forward(inputs)
    for leaf in jax.tree_util.tree_leaves(outputs):
        jax.block_until_ready(leaf)

    # ---- correctness checks against pure-JAX references ----
    # mask loss + iou_measure
    ref_mask_loss = jnp.mean(jax.nn.softplus(-target_mask * mrcnn_mask))
    pred_pos = mrcnn_mask >= 0
    lab_pos = target_mask == 1
    intxn = jnp.sum(jnp.logical_and(pred_pos, lab_pos), axis=1).astype(jnp.float32)
    union = jnp.sum(jnp.logical_or(pred_pos, lab_pos), axis=1).astype(jnp.float32)
    ref_iou = intxn / union
    np.testing.assert_allclose(np.asarray(outputs["losses"][0]),
                               np.asarray(ref_mask_loss), rtol=1e-4, atol=1e-5)
    np.testing.assert_allclose(np.asarray(outputs["accuracy"][0]),
                               np.asarray(jnp.mean(ref_iou)), rtol=1e-5, atol=1e-6)
    np.testing.assert_allclose(np.asarray(outputs["accuracy"][1]),
                               np.asarray(jnp.sum(ref_iou > 0.5) / Np), rtol=0, atol=1e-6)
    np.testing.assert_allclose(np.asarray(outputs["accuracy"][2]),
                               np.asarray(jnp.sum(ref_iou > 0.7) / Np), rtol=0, atol=1e-6)

    # fused softmax + select_cross_entropy_loss
    x0 = rpn_pred_cls[:, :k]
    x1 = rpn_pred_cls[:, k:]
    lse = jnp.logaddexp(x0, x1)
    lp0, lp1 = x0 - lse, x1 - lse
    pos = label_cls == 1
    neg = label_cls == 0
    cp = jnp.sum(pos).astype(jnp.float32)
    cn = jnp.sum(neg).astype(jnp.float32)
    loss_pos = jnp.where(cp > 0, jnp.sum(jnp.where(pos, -lp1, 0.0)) / jnp.maximum(cp, 1.0), 0.0)
    loss_neg = jnp.where(cn > 0, jnp.sum(jnp.where(neg, -lp0, 0.0)) / jnp.maximum(cn, 1.0), 0.0)
    ref_cls = 0.5 * loss_pos + 0.5 * loss_neg
    np.testing.assert_allclose(np.asarray(outputs["rpn_loss_cls"]),
                               np.asarray(ref_cls), rtol=1e-4, atol=1e-5)

    # weight_l1_loss
    p5 = rpn_pred_loc.reshape(b, 4, k, h, w)
    ref_wl1 = jnp.sum(jnp.sum(jnp.abs(p5 - label_loc), axis=1) * label_loc_weight) / b
    np.testing.assert_allclose(np.asarray(outputs["rpn_loss_loc"]),
                               np.asarray(ref_wl1), rtol=1e-4, atol=1e-4)

    # standalone softmax method (API parity path)
    log_cls = model.softmax(rpn_pred_cls)
    ref_lsm = jax.nn.log_softmax(jnp.stack([x0, x1], axis=-1), axis=-1)
    np.testing.assert_allclose(np.asarray(log_cls), np.asarray(ref_lsm),
                               rtol=1e-5, atol=1e-5)

    print("KERNEL_OK")
</pallas_src>

<mosaic_0001>
module attributes {stable_mosaic.version = 11 : i64} {
  func.func @kernel(%arg0: i32, %arg1: memref<16x896xf32, #tpu.memory_space<vmem>>, %arg2: memref<16x896xf32, #tpu.memory_space<vmem>>, %arg3: memref<1x128xf32, #tpu.memory_space<vmem>>, %arg4: memref<1x128xf32, #tpu.memory_space<vmem>>) attributes {dimension_semantics = [#tpu.dimension_semantics<arbitrary>], iteration_bounds = array<i64: 1>, scalar_prefetch = 0 : i64, scratch_operands = 1 : i64, tpu.core_type = #tpu.core_type<tc>, window_params = [{transform_indices = @transform_0, window_bounds = array<i64: 16, 896>}, {transform_indices = @transform_1, window_bounds = array<i64: 16, 896>}, {pipeline_mode = #tpu.pipeline_mode<synchronous>, transform_indices = @transform_2, window_bounds = array<i64: 1, 128>}]} {
    %c0_i32 = arith.constant 0 : i32
    %0 = arith.cmpi eq, %arg0, %c0_i32 : i32
    %1 = arith.extui %0 : i1 to i32
    %c0_i32_0 = arith.constant 0 : i32
    %2 = arith.cmpi ne, %1, %c0_i32_0 : i32
    scf.if %2 {
      %cst_29 = arith.constant 0.000000e+00 : f32
      %103 = vector.broadcast %cst_29 : f32 to vector<1x128xf32>
      %c0_30 = arith.constant 0 : index
      %c0_31 = arith.constant 0 : index
      %104 = vector.load %arg4[%c0_30, %c0_31] : memref<1x128xf32, #tpu.memory_space<vmem>>, vector<1x128xf32>
      tpu.vector_store %arg4[%c0_30, %c0_31], %103 {strides = array<i32>} : memref<1x128xf32, #tpu.memory_space<vmem>>, vector<1x128xf32>,
    } else {
    }
    %c0 = arith.constant 0 : index
    %c0_1 = arith.constant 0 : index
    %3 = vector.load %arg1[%c0, %c0_1] : memref<16x896xf32, #tpu.memory_space<vmem>>, vector<16x896xf32>
    %c0_2 = arith.constant 0 : index
    %c0_3 = arith.constant 0 : index
    %4 = vector.load %arg2[%c0_2, %c0_3] : memref<16x896xf32, #tpu.memory_space<vmem>>, vector<16x896xf32>
    %cst = arith.constant 0.000000e+00 : f32
    %5 = vector.broadcast %cst : f32 to vector<16x896xf32>
    %6 = arith.subf %5, %4 : vector<16x896xf32>
    %7 = arith.mulf %6, %3 : vector<16x896xf32>
    %cst_4 = arith.constant 0.000000e+00 : f32
    %8 = vector.broadcast %cst_4 : f32 to vector<16x896xf32>
    %9 = arith.maximumf %7, %8 : vector<16x896xf32>
    %10 = vector.broadcast %cst_4 : f32 to vector<16x896xf32>
    %11 = arith.subf %7, %10 : vector<16x896xf32>
    %12 = arith.cmpf one, %11, %11 : vector<16x896xf32>
    %13 = vector.broadcast %cst_4 : f32 to vector<16x896xf32>
    %14 = arith.addf %7, %13 : vector<16x896xf32>
    %15 = math.absf %11 : vector<16x896xf32>
    %cst_5 = arith.constant 0.000000e+00 : f32
    %16 = vector.broadcast %cst_5 : f32 to vector<16x896xf32>
    %17 = arith.subf %16, %15 : vector<16x896xf32>
    %18 = math.exp %17 : vector<16x896xf32>
    %19 = math.log1p %18 : vector<16x896xf32>
    %20 = arith.addf %9, %19 : vector<16x896xf32>
    %21 = arith.select %12, %14, %20 : vector<16x896xi1>, vector<16x896xf32>
    %cst_6 = arith.constant 0.000000e+00 : f32
    %22 = vector.broadcast %cst_6 : f32 to vector<16x896xf32>
    %23 = arith.cmpf oge, %3, %22 : vector<16x896xf32>
    %cst_7 = arith.constant 1.000000e+00 : f32
    %24 = vector.broadcast %cst_7 : f32 to vector<16x896xf32>
    %25 = arith.cmpf oeq, %4, %24 : vector<16x896xf32>
    %26 = arith.andi %23, %25 : vector<16x896xi1>
    %27 = arith.extui %26 : vector<16x896xi1> to vector<16x896xi32>
    %28 = arith.sitofp %27 : vector<16x896xi32> to vector<16x896xf32>
    %cst_8 = arith.constant dense<0.000000e+00> : vector<16xf32>
    %29 = vector.multi_reduction <add>, %28, %cst_8 [1] : vector<16x896xf32> to vector<16xf32>
    %30 = vector.shape_cast %29 : vector<16xf32> to vector<16x1xf32>
    %31 = arith.ori %23, %25 : vector<16x896xi1>
    %32 = arith.extui %31 : vector<16x896xi1> to vector<16x896xi32>
    %33 = arith.sitofp %32 : vector<16x896xi32> to vector<16x896xf32>
    %cst_9 = arith.constant dense<0.000000e+00> : vector<16xf32>
    %34 = vector.multi_reduction <add>, %33, %cst_9 [1] : vector<16x896xf32> to vector<16xf32>
    %35 = vector.shape_cast %34 : vector<16xf32> to vector<16x1xf32>
    %cst_10 = arith.constant 0.000000e+00 : f32
    %36 = vector.broadcast %cst_10 : f32 to vector<16x1xf32>
    %37 = arith.cmpf ogt, %35, %36 : vector<16x1xf32>
    %cst_11 = arith.constant 1.000000e+00 : f32
    %38 = vector.broadcast %cst_11 : f32 to vector<16x1xf32>
    %39 = arith.select %37, %35, %38 : vector<16x1xi1>, vector<16x1xf32>
    %40 = arith.divf %30, %39 : vector<16x1xf32>
    %41 = vector.shape_cast %21 : vector<16x896xf32> to vector<1x16x896xf32>
    %cst_12 = arith.constant dense<0.000000e+00> : vector<1xf32>
    %42 = vector.multi_reduction <add>, %41, %cst_12 [1, 2] : vector<1x16x896xf32> to vector<1xf32>
    %43 = vector.shape_cast %42 : vector<1xf32> to vector<1x1x1xf32>
    %44 = vector.extract %43[0, 0, 0] : f32 from vector<1x1x1xf32>
    %45 = vector.broadcast %44 : f32 to vector<1x1xf32>
    %46 = vector.shape_cast %40 : vector<16x1xf32> to vector<1x16x1xf32>
    %cst_13 = arith.constant dense<0.000000e+00> : vector<1xf32>
    %47 = vector.multi_reduction <add>, %46, %cst_13 [1, 2] : vector<1x16x1xf32> to vector<1xf32>
    %48 = vector.shape_cast %47 : vector<1xf32> to vector<1x1x1xf32>
    %49 = vector.extract %48[0, 0, 0] : f32 from vector<1x1x1xf32>
    %50 = vector.broadcast %49 : f32 to vector<1x1xf32>
    %cst_14 = arith.constant 5.000000e-01 : f32
    %51 = vector.broadcast %cst_14 : f32 to vector<16x1xf32>
    %52 = arith.cmpf ogt, %40, %51 : vector<16x1xf32>
    %53 = arith.extui %52 : vector<16x1xi1> to vector<16x1xi32>
    %54 = arith.sitofp %53 : vector<16x1xi32> to vector<16x1xf32>
    %55 = vector.shape_cast %54 : vector<16x1xf32> to vector<1x16x1xf32>
    %cst_15 = arith.constant dense<0.000000e+00> : vector<1xf32>
    %56 = vector.multi_reduction <add>, %55, %cst_15 [1, 2] : vector<1x16x1xf32> to vector<1xf32>
    %57 = vector.shape_cast %56 : vector<1xf32> to vector<1x1x1xf32>
    %58 = vector.extract %57[0, 0, 0] : f32 from vector<1x1x1xf32>
    %59 = vector.broadcast %58 : f32 to vector<1x1xf32>
    %cst_16 = arith.constant 0.699999988 : f32
    %60 = vector.broadcast %cst_16 : f32 to vector<16x1xf32>
    %61 = arith.cmpf ogt, %40, %60 : vector<16x1xf32>
    %62 = arith.extui %61 : vector<16x1xi1> to vector<16x1xi32>
    %63 = arith.sitofp %62 : vector<16x1xi32> to vector<16x1xf32>
    %64 = vector.shape_cast %63 : vector<16x1xf32> to vector<1x16x1xf32>
    %cst_17 = arith.constant dense<0.000000e+00> : vector<1xf32>
    %65 = vector.multi_reduction <add>, %64, %cst_17 [1, 2] : vector<1x16x1xf32> to vector<1xf32>
    %66 = vector.shape_cast %65 : vector<1xf32> to vector<1x1x1xf32>
    %67 = vector.extract %66[0, 0, 0] : f32 from vector<1x1x1xf32>
    %68 = vector.broadcast %67 : f32 to vector<1x1xf32>
    %69 = tpu.iota {dimensions = array<i32: 1>} : vector<1x128xi32>
    %c0_18 = arith.constant 0 : index
    %c0_19 = arith.constant 0 : index
    %70 = vector.load %arg4[%c0_18, %c0_19] : memref<1x128xf32, #tpu.memory_space<vmem>>, vector<1x128xf32>
    %c0_i32_20 = arith.constant 0 : i32
    %71 = vector.broadcast %c0_i32_20 : i32 to vector<1x128xi32>
    %72 = arith.cmpi eq, %69, %71 : vector<1x128xi32>
    %cst_21 = arith.constant 0.000000e+00 : f32
    %73 = vector.shape_cast %45 : vector<1x1xf32> to vector<1x1xf32>
    %74 = vector.broadcast %73 : vector<1x1xf32> to vector<1x128xf32>
    %75 = vector.broadcast %cst_21 : f32 to vector<1x128xf32>
    %76 = arith.select %72, %74, %75 : vector<1x128xi1>, vector<1x128xf32>
    %c1_i32 = arith.constant 1 : i32
    %77 = vector.broadcast %c1_i32 : i32 to vector<1x128xi32>
    %78 = arith.cmpi eq, %69, %77 : vector<1x128xi32>
    %cst_22 = arith.constant 0.000000e+00 : f32
    %79 = vector.shape_cast %50 : vector<1x1xf32> to vector<1x1xf32>
    %80 = vector.broadcast %79 : vector<1x1xf32> to vector<1x128xf32>
    %81 = vector.broadcast %cst_22 : f32 to vector<1x128xf32>
    %82 = arith.select %78, %80, %81 : vector<1x128xi1>, vector<1x128xf32>
    %83 = arith.addf %76, %82 : vector<1x128xf32>
    %c2_i32 = arith.constant 2 : i32
    %84 = vector.broadcast %c2_i32 : i32 to vector<1x128xi32>
    %85 = arith.cmpi eq, %69, %84 : vector<1x128xi32>
    %cst_23 = arith.constant 0.000000e+00 : f32
    %86 = vector.shape_cast %59 : vector<1x1xf32> to vector<1x1xf32>
    %87 = vector.broadcast %86 : vector<1x1xf32> to vector<1x128xf32>
    %88 = vector.broadcast %cst_23 : f32 to vector<1x128xf32>
    %89 = arith.select %85, %87, %88 : vector<1x128xi1>, vector<1x128xf32>
    %90 = arith.addf %83, %89 : vector<1x128xf32>
    %c3_i32 = arith.constant 3 : i32
    %91 = vector.broadcast %c3_i32 : i32 to vector<1x128xi32>
    %92 = arith.cmpi eq, %69, %91 : vector<1x128xi32>
    %cst_24 = arith.constant 0.000000e+00 : f32
    %93 = vector.shape_cast %68 : vector<1x1xf32> to vector<1x1xf32>
    %94 = vector.broadcast %93 : vector<1x1xf32> to vector<1x128xf32>
    %95 = vector.broadcast %cst_24 : f32 to vector<1x128xf32>
    %96 = arith.select %92, %94, %95 : vector<1x128xi1>, vector<1x128xf32>
    %97 = arith.addf %90, %96 : vector<1x128xf32>
    %98 = arith.addf %70, %97 : vector<1x128xf32>
    %c0_25 = arith.constant 0 : index
    %c0_26 = arith.constant 0 : index
    %99 = vector.load %arg4[%c0_25, %c0_26] : memref<1x128xf32, #tpu.memory_space<vmem>>, vector<1x128xf32>
    tpu.vector_store %arg4[%c0_25, %c0_26], %98 {strides = array<i32>} : memref<1x128xf32, #tpu.memory_space<vmem>>, vector<1x128xf32>,
    %c0_i32_27 = arith.constant 0 : i32
    %100 = arith.cmpi eq, %arg0, %c0_i32_27 : i32
    %101 = arith.extui %100 : i1 to i32
    %c0_i32_28 = arith.constant 0 : i32
    %102 = arith.cmpi ne, %101, %c0_i32_28 : i32
    scf.if %102 {
      %c0_i32_29 = arith.constant 0 : i32
      %103 = vector.broadcast %c0_i32_29 : i32 to vector<1x128xi32>
      %104 = arith.cmpi eq, %69, %103 : vector<1x128xi32>
      %cst_30 = arith.constant 7.97193861E-5 : f32
      %cst_31 = arith.constant 6.250000e-02 : f32
      %105 = vector.broadcast %cst_30 : f32 to vector<1x128xf32>
      %106 = vector.broadcast %cst_31 : f32 to vector<1x128xf32>
      %107 = arith.select %104, %105, %106 : vector<1x128xi1>, vector<1x128xf32>
      %c0_32 = arith.constant 0 : index
      %c0_33 = arith.constant 0 : index
      %108 = vector.load %arg4[%c0_32, %c0_33] : memref<1x128xf32, #tpu.memory_space<vmem>>, vector<1x128xf32>
      %109 = arith.mulf %108, %107 : vector<1x128xf32>
      %c0_34 = arith.constant 0 : index
      %c0_35 = arith.constant 0 : index
      %110 = vector.load %arg3[%c0_34, %c0_35] : memref<1x128xf32, #tpu.memory_space<vmem>>, vector<1x128xf32>
      tpu.vector_store %arg3[%c0_34, %c0_35], %109 {strides = array<i32>} : memref<1x128xf32, #tpu.memory_space<vmem>>, vector<1x128xf32>,
    } else {
    }
    return
  }
  func.func @transform_0(%arg0: i32) -> (i32, i32) {
    %c0_i32 = arith.constant 0 : i32
    %c0_i32_0 = arith.constant 0 : i32
    return %arg0, %c0_i32 : i32, i32
  }
  func.func @transform_1(%arg0: i32) -> (i32, i32) {
    %c0_i32 = arith.constant 0 : i32
    %c0_i32_0 = arith.constant 0 : i32
    return %arg0, %c0_i32 : i32, i32
  }
  func.func @transform_2(%arg0: i32) -> (i32, i32) {
    %c0_i32 = arith.constant 0 : i32
    %c0_i32_0 = arith.constant 0 : i32
    %c0_i32_1 = arith.constant 0 : i32
    return %c0_i32, %c0_i32_0 : i32, i32
  }
}

</mosaic_0001>

<llo_original>
// kernel: tpu_custom_call.1
$region0: #{tpu_custom_call.1}
  #allocation0 [shape = 'u32[]', space=smem, size = 0x4, offset = 0x4, fixed_abs, tag = 'smem constant byte address 0x4 - core index']
  #allocation1 [shape = 'u32[144,128]{1,0:T(1,128)}', space=vmem, size = 0x12000, scoped, tag = 'internal scratch']
  #allocation2 [shape = 'f32[1,128]{1,0:T(1,128)}', space=vmem, size = 0x200, scoped, tag = 'scratch operand']
  %s0 = inlined_call_operand.hbm [shape: f32[16,896], index: 0, kind: input, shape index: {}]
  %s1 = inlined_call_operand.hbm [shape: f32[16,896], index: 1, kind: input, shape index: {}]
  %s2 = inlined_call_operand.hbm [shape: f32[1,128], index: 2, kind: output, shape index: {}]
  %s3 = sld [smem:[#allocation0]]
  $region34: #{tpu_custom_call.1} parent=0
    _
  %s5 = ssub.s32 1, %s3
  %s6 = scalar_select 0, %s5, %s3
  $region1: #{tpu_custom_call.1} parent=0
    #allocation3 [shape = 'u8[57344]{0}', space=vmem, size = 0xe000, scoped, tag = 'input window, operand 0, single buffered']
    #allocation4 [shape = 's32[1]{0}', space=sflag, size = 0x4, scoped, tag = 'scoped memory for tpu_custom_call.1']
    #allocation5 [shape = 's32[1]{0}', space=sflag, size = 0x4, scoped, tag = 'scoped memory for tpu_custom_call.1']
    #allocation6 [shape = 'u8[57344]{0}', space=vmem, size = 0xe000, scoped, tag = 'input window, operand 1, single buffered']
    #allocation7 [shape = 's32[1]{0}', space=sflag, size = 0x4, scoped, tag = 'scoped memory for tpu_custom_call.1']
    #allocation8 [shape = 'u8[512]{0}', space=vmem, size = 0x400, scoped, tag = 'output window, operand 0, single buffered']
    %7 = vsyncpa [#allocation4], 0
    %8 = vsyncpa [#allocation7], 0
    %9 = vsyncpa [#allocation5], 0
    // Predicated region
    $region2: #{tpu_custom_call.1} parent=1 // pred_check
      _
    $region3: #{tpu_custom_call.1} parent=1 // pred_check_branch
      %11 = sbr.rel (0) target = $region5
    $region4: #{tpu_custom_call.1} parent=1 // pred_region
      %s13 = ssub.s32 1792, 1792
      %14 = vsyncadd [#allocation4], %s13
      %s15 = sshll.u32 [#allocation3], 4
      %s16 = int_to_ptr.vmem [resolvable:$true] %s15
      %21 = dma.hbm_to_vmem [thread:$0]  %s0, 1792, %s16, [#allocation4], 896, 896, 56
    $region5: #{tpu_custom_call.1} parent=1 // pred_fallthru
      _
    // Predicated region
    $region6: #{tpu_custom_call.1} parent=1 // pred_check
      _
    $region7: #{tpu_custom_call.1} parent=1 // pred_check_branch
      %23 = sbr.rel (0) target = $region9
    $region8: #{tpu_custom_call.1} parent=1 // pred_region
      %s25 = ssub.s32 1792, 1792
      %26 = vsyncadd [#allocation7], %s25
      %s27 = sshll.u32 [#allocation6], 4
      %s28 = int_to_ptr.vmem [resolvable:$true] %s27
      %33 = dma.hbm_to_vmem [thread:$0]  %s1, 1792, %s28, [#allocation7], 896, 896, 56
    $region9: #{tpu_custom_call.1} parent=1 // pred_fallthru
      _
    // Predicated region
    $region10: #{tpu_custom_call.1} parent=1 // pred_check
      _
    $region11: #{tpu_custom_call.1} parent=1 // pred_check_branch
      %35 = sbr.rel (0) target = $region13
    $region12: #{tpu_custom_call.1} parent=1 // pred_region
      %36 = dma.done [#allocation4], 1792
    $region13: #{tpu_custom_call.1} parent=1 // pred_fallthru
      _
    // Predicated region
    $region14: #{tpu_custom_call.1} parent=1 // pred_check
      _
    $region15: #{tpu_custom_call.1} parent=1 // pred_check_branch
      %38 = sbr.rel (0) target = $region17
    $region16: #{tpu_custom_call.1} parent=1 // pred_region
      %39 = dma.done [#allocation7], 1792
    $region17: #{tpu_custom_call.1} parent=1 // pred_fallthru
      _
    %p40 = scmp.eq.s32.totalorder 0, 0
    // Predicated region
    $region18: #{tpu_custom_call.1} parent=1 // pred_check
      %p41 = pneg %p40
    $region19: #{tpu_custom_call.1} parent=1 // pred_check_branch
      %43 = sbr.rel (%p41) target = $region21
    $region20: #{tpu_custom_call.1} parent=1 // pred_region
      %44 = vst [vmem:[#allocation2] sm:$0x1] 0.0
    $region21: #{tpu_custom_call.1} parent=1 // pred_fallthru
      _
    %v45 = vld [vmem:[#allocation3] sm:$0xff]
    %v46 = vld [vmem:[#allocation3 + $0x8] sm:$0xff]
    %v47 = vld [vmem:[#allocation3 + $0x10] sm:$0xff]
    %v48 = vld [vmem:[#allocation3 + $0x18] sm:$0xff]
    %v49 = vld [vmem:[#allocation3 + $0x20] sm:$0xff]
    %v50 = vld [vmem:[#allocation3 + $0x28] sm:$0xff]
    %v51 = vld [vmem:[#allocation3 + $0x30] sm:$0xff]
    %v52 = vld [vmem:[#allocation3 + $0x38] sm:$0xff]
    %v53 = vld [vmem:[#allocation3 + $0x40] sm:$0xff]
    %v54 = vld [vmem:[#allocation3 + $0x48] sm:$0xff]
    %v55 = vld [vmem:[#allocation3 + $0x50] sm:$0xff]
    %v56 = vld [vmem:[#allocation3 + $0x58] sm:$0xff]
    %v57 = vld [vmem:[#allocation3 + $0x60] sm:$0xff]
    %v58 = vld [vmem:[#allocation3 + $0x68] sm:$0xff]
    %v59 = vld [vmem:[#allocation6] sm:$0xff]
    %v60 = vld [vmem:[#allocation6 + $0x8] sm:$0xff]
    %v61 = vld [vmem:[#allocation6 + $0x10] sm:$0xff]
    %v62 = vld [vmem:[#allocation6 + $0x18] sm:$0xff]
    %v63 = vld [vmem:[#allocation6 + $0x20] sm:$0xff]
    %v64 = vld [vmem:[#allocation6 + $0x28] sm:$0xff]
    %v65 = vld [vmem:[#allocation6 + $0x30] sm:$0xff]
    %v66 = vld [vmem:[#allocation6 + $0x38] sm:$0xff]
    %v67 = vld [vmem:[#allocation6 + $0x40] sm:$0xff]
    %v68 = vld [vmem:[#allocation6 + $0x48] sm:$0xff]
    %v69 = vld [vmem:[#allocation6 + $0x50] sm:$0xff]
    %v70 = vld [vmem:[#allocation6 + $0x58] sm:$0xff]
    %v71 = vld [vmem:[#allocation6 + $0x60] sm:$0xff]
    %v72 = vld [vmem:[#allocation6 + $0x68] sm:$0xff]
    %v73 = vsub.f32 0.0, %v59
    %v74 = vsub.f32 0.0, %v60
    %v75 = vsub.f32 0.0, %v61
    %v76 = vsub.f32 0.0, %v62
    %v77 = vsub.f32 0.0, %v63
    %v78 = vsub.f32 0.0, %v64
    %v79 = vsub.f32 0.0, %v65
    %v80 = vsub.f32 0.0, %v66
    %v81 = vsub.f32 0.0, %v67
    %v82 = vsub.f32 0.0, %v68
    %v83 = vsub.f32 0.0, %v69
    %v84 = vsub.f32 0.0, %v70
    %v85 = vsub.f32 0.0, %v71
    %v86 = vsub.f32 0.0, %v72
    %v87 = vmul.f32 %v73, %v45
    %v88 = vmul.f32 %v74, %v46
    %v89 = vmul.f32 %v75, %v47
    %v90 = vmul.f32 %v76, %v48
    %v91 = vmul.f32 %v77, %v49
    %v92 = vmul.f32 %v78, %v50
    %v93 = vmul.f32 %v79, %v51
    %v94 = vmul.f32 %v80, %v52
    %v95 = vmul.f32 %v81, %v53
    %v96 = vmul.f32 %v82, %v54
    %v97 = vmul.f32 %v83, %v55
    %v98 = vmul.f32 %v84, %v56
    %v99 = vmul.f32 %v85, %v57
    %v100 = vmul.f32 %v86, %v58
    %v101 = vmax.f32 %v87, 0.0
    %v102 = vmax.f32 %v88, 0.0
    %v103 = vmax.f32 %v89, 0.0
    %v104 = vmax.f32 %v90, 0.0
    %v105 = vmax.f32 %v91, 0.0
    %v106 = vmax.f32 %v92, 0.0
    %v107 = vmax.f32 %v93, 0.0
    %v108 = vmax.f32 %v94, 0.0
    %v109 = vmax.f32 %v95, 0.0
    %v110 = vmax.f32 %v96, 0.0
    %v111 = vmax.f32 %v97, 0.0
    %v112 = vmax.f32 %v98, 0.0
    %v113 = vmax.f32 %v99, 0.0
    %v114 = vmax.f32 %v100, 0.0
    %vm115 = vcmp.ne.f32.partialorder %v87, %v87
    %vm116 = vcmp.ne.f32.partialorder %v88, %v88
    %vm117 = vcmp.ne.f32.partialorder %v89, %v89
    %vm118 = vcmp.ne.f32.partialorder %v90, %v90
    %vm119 = vcmp.ne.f32.partialorder %v91, %v91
    %vm120 = vcmp.ne.f32.partialorder %v92, %v92
    %vm121 = vcmp.ne.f32.partialorder %v93, %v93
    %vm122 = vcmp.ne.f32.partialorder %v94, %v94
    %vm123 = vcmp.ne.f32.partialorder %v95, %v95
    %vm124 = vcmp.ne.f32.partialorder %v96, %v96
    %vm125 = vcmp.ne.f32.partialorder %v97, %v97
    %vm126 = vcmp.ne.f32.partialorder %v98, %v98
    %vm127 = vcmp.ne.f32.partialorder %v99, %v99
    %vm128 = vcmp.ne.f32.partialorder %v100, %v100
    %v129 = vadd.f32 %v87, 0.0
    %v130 = vadd.f32 %v88, 0.0
    %v131 = vadd.f32 %v89, 0.0
    %v132 = vadd.f32 %v90, 0.0
    %v133 = vadd.f32 %v91, 0.0
    %v134 = vadd.f32 %v92, 0.0
    %v135 = vadd.f32 %v93, 0.0
    %v136 = vadd.f32 %v94, 0.0
    %v137 = vadd.f32 %v95, 0.0
    %v138 = vadd.f32 %v96, 0.0
    %v139 = vadd.f32 %v97, 0.0
    %v140 = vadd.f32 %v98, 0.0
    %v141 = vadd.f32 %v99, 0.0
    %v142 = vadd.f32 %v100, 0.0
    %v143 = vand.u32 2147483647, %v87
    %v144 = vand.u32 2147483647, %v88
    %v145 = vand.u32 2147483647, %v89
    %v146 = vand.u32 2147483647, %v90
    %v147 = vand.u32 2147483647, %v91
    %v148 = vand.u32 2147483647, %v92
    %v149 = vand.u32 2147483647, %v93
    %v150 = vand.u32 2147483647, %v94
    %v151 = vand.u32 2147483647, %v95
    %v152 = vand.u32 2147483647, %v96
    %v153 = vand.u32 2147483647, %v97
    %v154 = vand.u32 2147483647, %v98
    %v155 = vand.u32 2147483647, %v99
    %v156 = vand.u32 2147483647, %v100
    %v157 = vsub.f32 0.0, %v143
    %v158 = vsub.f32 0.0, %v144
    %v159 = vsub.f32 0.0, %v145
    %v160 = vsub.f32 0.0, %v146
    %v161 = vsub.f32 0.0, %v147
    %v162 = vsub.f32 0.0, %v148
    %v163 = vsub.f32 0.0, %v149
    %v164 = vsub.f32 0.0, %v150
    %v165 = vsub.f32 0.0, %v151
    %v166 = vsub.f32 0.0, %v152
    %v167 = vsub.f32 0.0, %v153
    %v168 = vsub.f32 0.0, %v154
    %v169 = vsub.f32 0.0, %v155
    %v170 = vsub.f32 0.0, %v156
    %v171 = vmul.f32 %v157, 1.442695
    %v172 = vpow.pop %v171
    %v173 = vmul.f32 %v158, 1.442695
    %v174 = vpow.pop %v173
    %v175 = vmul.f32 %v159, 1.442695
    %v176 = vpow.pop %v175
    %v177 = vmul.f32 %v160, 1.442695
    %v178 = vpow.pop %v177
    %v179 = vmul.f32 %v161, 1.442695
    %v180 = vpow.pop %v179
    %v181 = vmul.f32 %v162, 1.442695
    %v182 = vpow.pop %v181
    %v183 = vmul.f32 %v163, 1.442695
    %v184 = vpow.pop %v183
    %v185 = vmul.f32 %v164, 1.442695
    %v186 = vpow.pop %v185
    %v187 = vmul.f32 %v165, 1.442695
    %v188 = vpow.pop %v187
    %v189 = vmul.f32 %v166, 1.442695
    %v190 = vpow.pop %v189
    %v191 = vmul.f32 %v167, 1.442695
    %v192 = vpow.pop %v191
    %v193 = vmul.f32 %v168, 1.442695
    %v194 = vpow.pop %v193
    %v195 = vmul.f32 %v169, 1.442695
    %v196 = vpow.pop %v195
    %v197 = vmul.f32 %v170, 1.442695
    %v198 = vpow.pop %v197
    %v199 = vadd.f32 %v172, 1.0
    %v200 = vlog2.pop %v199
    %v201 = vmul.f32 %v200, 0.6931472
    %v202 = vmul.f32 -0.5, %v172
    %v203 = vadd.f32 %v202, 1.0
    %v204 = vmul.f32 %v203, %v172
    %v205 = vand.u32 2147483647, %v172
    %vm206 = vcmp.lt.f32.partialorder %v205, 0.0004427343
    %v207 = vsel %vm206, %v204, %v201
    %v208 = vadd.f32 %v174, 1.0
    %v209 = vlog2.pop %v208
    %v210 = vmul.f32 %v209, 0.6931472
    %v211 = vmul.f32 -0.5, %v174
    %v212 = vadd.f32 %v211, 1.0
    %v213 = vmul.f32 %v212, %v174
    %v214 = vand.u32 2147483647, %v174
    %vm215 = vcmp.lt.f32.partialorder %v214, 0.0004427343
    %v216 = vsel %vm215, %v213, %v210
    %v217 = vadd.f32 %v176, 1.0
    %v218 = vlog2.pop %v217
    %v219 = vmul.f32 %v218, 0.6931472
    %v220 = vmul.f32 -0.5, %v176
    %v221 = vadd.f32 %v220, 1.0
    %v222 = vmul.f32 %v221, %v176
    %v223 = vand.u32 2147483647, %v176
    %vm224 = vcmp.lt.f32.partialorder %v223, 0.0004427343
    %v225 = vsel %vm224, %v222, %v219
    %v226 = vadd.f32 %v178, 1.0
    %v227 = vlog2.pop %v226
    %v228 = vmul.f32 %v227, 0.6931472
    %v229 = vmul.f32 -0.5, %v178
    %v230 = vadd.f32 %v229, 1.0
    %v231 = vmul.f32 %v230, %v178
    %v232 = vand.u32 2147483647, %v178
    %vm233 = vcmp.lt.f32.partialorder %v232, 0.0004427343
    %v234 = vsel %vm233, %v231, %v228
    %v235 = vadd.f32 %v180, 1.0
    %v236 = vlog2.pop %v235
    %v237 = vmul.f32 %v236, 0.6931472
    %v238 = vmul.f32 -0.5, %v180
    %v239 = vadd.f32 %v238, 1.0
    %v240 = vmul.f32 %v239, %v180
    %v241 = vand.u32 2147483647, %v180
    %vm242 = vcmp.lt.f32.partialorder %v241, 0.0004427343
    %v243 = vsel %vm242, %v240, %v237
    %v244 = vadd.f32 %v182, 1.0
    %v245 = vlog2.pop %v244
    %v246 = vmul.f32 %v245, 0.6931472
    %v247 = vmul.f32 -0.5, %v182
    %v248 = vadd.f32 %v247, 1.0
    %v249 = vmul.f32 %v248, %v182
    %v250 = vand.u32 2147483647, %v182
    %vm251 = vcmp.lt.f32.partialorder %v250, 0.0004427343
    %v252 = vsel %vm251, %v249, %v246
    %v253 = vadd.f32 %v184, 1.0
    %v254 = vlog2.pop %v253
    %v255 = vmul.f32 %v254, 0.6931472
    %v256 = vmul.f32 -0.5, %v184
    %v257 = vadd.f32 %v256, 1.0
    %v258 = vmul.f32 %v257, %v184
    %v259 = vand.u32 2147483647, %v184
    %vm260 = vcmp.lt.f32.partialorder %v259, 0.0004427343
    %v261 = vsel %vm260, %v258, %v255
    %v262 = vadd.f32 %v186, 1.0
    %v263 = vlog2.pop %v262
    %v264 = vmul.f32 %v263, 0.6931472
    %v265 = vmul.f32 -0.5, %v186
    %v266 = vadd.f32 %v265, 1.0
    %v267 = vmul.f32 %v266, %v186
    %v268 = vand.u32 2147483647, %v186
    %vm269 = vcmp.lt.f32.partialorder %v268, 0.0004427343
    %v270 = vsel %vm269, %v267, %v264
    %v271 = vadd.f32 %v188, 1.0
    %v272 = vlog2.pop %v271
    %v273 = vmul.f32 %v272, 0.6931472
    %v274 = vmul.f32 -0.5, %v188
    %v275 = vadd.f32 %v274, 1.0
    %v276 = vmul.f32 %v275, %v188
    %v277 = vand.u32 2147483647, %v188
    %vm278 = vcmp.lt.f32.partialorder %v277, 0.0004427343
    %v279 = vsel %vm278, %v276, %v273
    %v280 = vadd.f32 %v190, 1.0
    %v281 = vlog2.pop %v280
    %v282 = vmul.f32 %v281, 0.6931472
    %v283 = vmul.f32 -0.5, %v190
    %v284 = vadd.f32 %v283, 1.0
    %v285 = vmul.f32 %v284, %v190
    %v286 = vand.u32 2147483647, %v190
    %vm287 = vcmp.lt.f32.partialorder %v286, 0.0004427343
    %v288 = vsel %vm287, %v285, %v282
    %v289 = vadd.f32 %v192, 1.0
    %v290 = vlog2.pop %v289
    %v291 = vmul.f32 %v290, 0.6931472
    %v292 = vmul.f32 -0.5, %v192
    %v293 = vadd.f32 %v292, 1.0
    %v294 = vmul.f32 %v293, %v192
    %v295 = vand.u32 2147483647, %v192
    %vm296 = vcmp.lt.f32.partialorder %v295, 0.0004427343
    %v297 = vsel %vm296, %v294, %v291
    %v298 = vadd.f32 %v194, 1.0
    %v299 = vlog2.pop %v298
    %v300 = vmul.f32 %v299, 0.6931472
    %v301 = vmul.f32 -0.5, %v194
    %v302 = vadd.f32 %v301, 1.0
    %v303 = vmul.f32 %v302, %v194
    %v304 = vand.u32 2147483647, %v194
    %vm305 = vcmp.lt.f32.partialorder %v304, 0.0004427343
    %v306 = vsel %vm305, %v303, %v300
    %v307 = vadd.f32 %v196, 1.0
    %v308 = vlog2.pop %v307
    %v309 = vmul.f32 %v308, 0.6931472
    %v310 = vmul.f32 -0.5, %v196
    %v311 = vadd.f32 %v310, 1.0
    %v312 = vmul.f32 %v311, %v196
    %v313 = vand.u32 2147483647, %v196
    %vm314 = vcmp.lt.f32.partialorder %v313, 0.0004427343
    %v315 = vsel %vm314, %v312, %v309
    %v316 = vadd.f32 %v198, 1.0
    %v317 = vlog2.pop %v316
    %v318 = vmul.f32 %v317, 0.6931472
    %v319 = vmul.f32 -0.5, %v198
    %v320 = vadd.f32 %v319, 1.0
    %v321 = vmul.f32 %v320, %v198
    %v322 = vand.u32 2147483647, %v198
    %vm323 = vcmp.lt.f32.partialorder %v322, 0.0004427343
    %v324 = vsel %vm323, %v321, %v318
    %v325 = vadd.f32 %v101, %v207
    %v326 = vadd.f32 %v102, %v216
    %v327 = vadd.f32 %v103, %v225
    %v328 = vadd.f32 %v104, %v234
    %v329 = vadd.f32 %v105, %v243
    %v330 = vadd.f32 %v106, %v252
    %v331 = vadd.f32 %v107, %v261
    %v332 = vadd.f32 %v108, %v270
    %v333 = vadd.f32 %v109, %v279
    %v334 = vadd.f32 %v110, %v288
    %v335 = vadd.f32 %v111, %v297
    %v336 = vadd.f32 %v112, %v306
    %v337 = vadd.f32 %v113, %v315
    %v338 = vadd.f32 %v114, %v324
    %v339 = vsel %vm115, %v129, %v325
    %v340 = vsel %vm116, %v130, %v326
    %v341 = vsel %vm117, %v131, %v327
    %v342 = vsel %vm118, %v132, %v328
    %v343 = vsel %vm119, %v133, %v329
    %v344 = vsel %vm120, %v134, %v330
    %v345 = vsel %vm121, %v135, %v331
    %v346 = vsel %vm122, %v136, %v332
    %v347 = vsel %vm123, %v137, %v333
    %v348 = vsel %vm124, %v138, %v334
    %v349 = vsel %vm125, %v139, %v335
    %v350 = vsel %vm126, %v140, %v336
    %v351 = vsel %vm127, %v141, %v337
    %v352 = vsel %vm128, %v142, %v338
    %vm353 = vcmp.ge.f32.partialorder %v45, 0.0
    %vm354 = vcmp.ge.f32.partialorder %v46, 0.0
    %vm355 = vcmp.ge.f32.partialorder %v47, 0.0
    %vm356 = vcmp.ge.f32.partialorder %v48, 0.0
    %vm357 = vcmp.ge.f32.partialorder %v49, 0.0
    %vm358 = vcmp.ge.f32.partialorder %v50, 0.0
    %vm359 = vcmp.ge.f32.partialorder %v51, 0.0
    %vm360 = vcmp.ge.f32.partialorder %v52, 0.0
    %vm361 = vcmp.ge.f32.partialorder %v53, 0.0
    %vm362 = vcmp.ge.f32.partialorder %v54, 0.0
    %vm363 = vcmp.ge.f32.partialorder %v55, 0.0
    %vm364 = vcmp.ge.f32.partialorder %v56, 0.0
    %vm365 = vcmp.ge.f32.partialorder %v57, 0.0
    %vm366 = vcmp.ge.f32.partialorder %v58, 0.0
    %vm367 = vcmp.eq.f32.partialorder %v59, 1.0
    %vm368 = vcmp.eq.f32.partialorder %v60, 1.0
    %vm369 = vcmp.eq.f32.partialorder %v61, 1.0
    %vm370 = vcmp.eq.f32.partialorder %v62, 1.0
    %vm371 = vcmp.eq.f32.partialorder %v63, 1.0
    %vm372 = vcmp.eq.f32.partialorder %v64, 1.0
    %vm373 = vcmp.eq.f32.partialorder %v65, 1.0
    %vm374 = vcmp.eq.f32.partialorder %v66, 1.0
    %vm375 = vcmp.eq.f32.partialorder %v67, 1.0
    %vm376 = vcmp.eq.f32.partialorder %v68, 1.0
    %vm377 = vcmp.eq.f32.partialorder %v69, 1.0
    %vm378 = vcmp.eq.f32.partialorder %v70, 1.0
    %vm379 = vcmp.eq.f32.partialorder %v71, 1.0
    %vm380 = vcmp.eq.f32.partialorder %v72, 1.0
    %vm381 = vmand %vm353, %vm367
    %vm382 = vmand %vm354, %vm368
    %vm383 = vmand %vm355, %vm369
    %vm384 = vmand %vm356, %vm370
    %vm385 = vmand %vm357, %vm371
    %vm386 = vmand %vm358, %vm372
    %vm387 = vmand %vm359, %vm373
    %vm388 = vmand %vm360, %vm374
    %vm389 = vmand %vm361, %vm375
    %vm390 = vmand %vm362, %vm376
    %vm391 = vmand %vm363, %vm377
    %vm392 = vmand %vm364, %vm378
    %vm393 = vmand %vm365, %vm379
    %vm394 = vmand %vm366, %vm380
    %v395 = vsel %vm381, 1, 0
    %v396 = vsel %vm382, 1, 0
    %v397 = vsel %vm383, 1, 0
    %v398 = vsel %vm384, 1, 0
    %v399 = vsel %vm385, 1, 0
    %v400 = vsel %vm386, 1, 0
    %v401 = vsel %vm387, 1, 0
    %v402 = vsel %vm388, 1, 0
    %v403 = vsel %vm389, 1, 0
    %v404 = vsel %vm390, 1, 0
    %v405 = vsel %vm391, 1, 0
    %v406 = vsel %vm392, 1, 0
    %v407 = vsel %vm393, 1, 0
    %v408 = vsel %vm394, 1, 0
    %v409 = vcvt.s32.f32 %v395
    %v410 = vcvt.s32.f32 %v396
    %v411 = vcvt.s32.f32 %v397
    %v412 = vcvt.s32.f32 %v398
    %v413 = vcvt.s32.f32 %v399
    %v414 = vcvt.s32.f32 %v400
    %v415 = vcvt.s32.f32 %v401
    %v416 = vcvt.s32.f32 %v402
    %v417 = vcvt.s32.f32 %v403
    %v418 = vcvt.s32.f32 %v404
    %v419 = vcvt.s32.f32 %v405
    %v420 = vcvt.s32.f32 %v406
    %v421 = vcvt.s32.f32 %v407
    %v422 = vcvt.s32.f32 %v408
    %v423 = vadd.f32 %v409, %v410
    %v424 = vadd.f32 %v423, %v411
    %v425 = vadd.f32 %v424, %v412
    %v426 = vadd.f32 %v425, %v413
    %v427 = vadd.f32 %v426, %v414
    %v428 = vadd.f32 %v427, %v415
    %429 = vadd.xlane.f32.xlu0 %v428
    %v430 = vpop.xlane.xlu0 %429
    %v431 = vadd.f32 %v416, %v417
    %v432 = vadd.f32 %v431, %v418
    %v433 = vadd.f32 %v432, %v419
    %v434 = vadd.f32 %v433, %v420
    %v435 = vadd.f32 %v434, %v421
    %v436 = vadd.f32 %v435, %v422
    %437 = vadd.xlane.f32.xlu0 %v436
    %v438 = vpop.xlane.xlu0 %437
    %vm439 = vmor %vm353, %vm367
    %vm440 = vmor %vm354, %vm368
    %vm441 = vmor %vm355, %vm369
    %vm442 = vmor %vm356, %vm370
    %vm443 = vmor %vm357, %vm371
    %vm444 = vmor %vm358, %vm372
    %vm445 = vmor %vm359, %vm373
    %vm446 = vmor %vm360, %vm374
    %vm447 = vmor %vm361, %vm375
    %vm448 = vmor %vm362, %vm376
    %vm449 = vmor %vm363, %vm377
    %vm450 = vmor %vm364, %vm378
    %vm451 = vmor %vm365, %vm379
    %vm452 = vmor %vm366, %vm380
    %v453 = vsel %vm439, 1, 0
    %v454 = vsel %vm440, 1, 0
    %v455 = vsel %vm441, 1, 0
    %v456 = vsel %vm442, 1, 0
    %v457 = vsel %vm443, 1, 0
    %v458 = vsel %vm444, 1, 0
    %v459 = vsel %vm445, 1, 0
    %v460 = vsel %vm446, 1, 0
    %v461 = vsel %vm447, 1, 0
    %v462 = vsel %vm448, 1, 0
    %v463 = vsel %vm449, 1, 0
    %v464 = vsel %vm450, 1, 0
    %v465 = vsel %vm451, 1, 0
    %v466 = vsel %vm452, 1, 0
    %v467 = vcvt.s32.f32 %v453
    %v468 = vcvt.s32.f32 %v454
    %v469 = vcvt.s32.f32 %v455
    %v470 = vcvt.s32.f32 %v456
    %v471 = vcvt.s32.f32 %v457
    %v472 = vcvt.s32.f32 %v458
    %v473 = vcvt.s32.f32 %v459
    %v474 = vcvt.s32.f32 %v460
    %v475 = vcvt.s32.f32 %v461
    %v476 = vcvt.s32.f32 %v462
    %v477 = vcvt.s32.f32 %v463
    %v478 = vcvt.s32.f32 %v464
    %v479 = vcvt.s32.f32 %v465
    %v480 = vcvt.s32.f32 %v466
    %v481 = vadd.f32 %v467, %v468
    %v482 = vadd.f32 %v481, %v469
    %v483 = vadd.f32 %v482, %v470
    %v484 = vadd.f32 %v483, %v471
    %v485 = vadd.f32 %v484, %v472
    %v486 = vadd.f32 %v485, %v473
    %487 = vadd.xlane.f32.xlu0 %v486
    %v488 = vpop.xlane.xlu0 %487
    %v489 = vadd.f32 %v474, %v475
    %v490 = vadd.f32 %v489, %v476
    %v491 = vadd.f32 %v490, %v477
    %v492 = vadd.f32 %v491, %v478
    %v493 = vadd.f32 %v492, %v479
    %v494 = vadd.f32 %v493, %v480
    %495 = vadd.xlane.f32.xlu0 %v494
    %v496 = vpop.xlane.xlu0 %495
    %vm497 = vcmp.gt.f32.partialorder %v488, 0.0
    %vm498 = vcmp.gt.f32.partialorder %v496, 0.0
    %v499 = vsel %vm497, %v488, 1.0
    %v500 = vsel %vm498, %v496, 1.0
    %v501 = vrcp.pop %v499
    %v502 = vmul.f32 %v430, %v501
    %v503 = vrcp.pop %v500
    %v504 = vmul.f32 %v438, %v503
    %v505 = vadd.f32 %v339, %v340
    %v506 = vadd.f32 %v505, %v341
    %v507 = vadd.f32 %v506, %v342
    %v508 = vadd.f32 %v507, %v343
    %v509 = vadd.f32 %v508, %v344
    %v510 = vadd.f32 %v509, %v345
    %v511 = vadd.f32 %v510, %v346
    %v512 = vadd.f32 %v511, %v347
    %v513 = vadd.f32 %v512, %v348
    %v514 = vadd.f32 %v513, %v349
    %v515 = vadd.f32 %v514, %v350
    %v516 = vadd.f32 %v515, %v351
    %v517 = vadd.f32 %v516, %v352
    %518 = vadd.xlane.f32.xlu0 %v517
    %v519 = vpop.xlane.xlu0 %518
    %v520 = vrot.slane %v519, 4
    %v521 = vadd.f32 %v519, %v520
    %v522 = vrot.slane %v521, 2
    %v523 = vadd.f32 %v521, %v522
    %v524 = vrot.slane %v523, 1
    %v525 = vadd.f32 %v523, %v524
    %s526 = vtos %v525
    %vm527 = vcmask 7168
    %v528 = vsel %vm527, %v502, 0.0
    %v529 = vsel %vm527, %v504, 0.0
    %v530 = vadd.f32 %v528, %v529
    %531 = vadd.xlane.f32.xlu0 %v530
    %v532 = vpop.xlane.xlu0 %531
    %v533 = vrot.slane %v532, 4
    %v534 = vadd.f32 %v532, %v533
    %v535 = vrot.slane %v534, 2
    %v536 = vadd.f32 %v534, %v535
    %v537 = vrot.slane %v536, 1
    %v538 = vadd.f32 %v536, %v537
    %s539 = vtos %v538
    %vm540 = vcmp.gt.f32.partialorder %v502, 0.5
    %vm541 = vcmp.gt.f32.partialorder %v504, 0.5
    %v542 = vsel %vm540, 1, 0
    %v543 = vsel %vm541, 1, 0
    %v544 = vcvt.s32.f32 %v542
    %v545 = vcvt.s32.f32 %v543
    %v546 = vsel %vm527, %v544, 0.0
    %v547 = vsel %vm527, %v545, 0.0
    %v548 = vadd.f32 %v546, %v547
    %549 = vadd.xlane.f32.xlu0 %v548
    %v550 = vpop.xlane.xlu0 %549
    %v551 = vrot.slane %v550, 4
    %v552 = vadd.f32 %v550, %v551
    %v553 = vrot.slane %v552, 2
    %v554 = vadd.f32 %v552, %v553
    %v555 = vrot.slane %v554, 1
    %v556 = vadd.f32 %v554, %v555
    %s557 = vtos %v556
    %vm558 = vcmp.gt.f32.partialorder %v502, 0.7
    %vm559 = vcmp.gt.f32.partialorder %v504, 0.7
    %v560 = vsel %vm558, 1, 0
    %v561 = vsel %vm559, 1, 0
    %v562 = vcvt.s32.f32 %v560
    %v563 = vcvt.s32.f32 %v561
    %v564 = vsel %vm527, %v562, 0.0
    %v565 = vsel %vm527, %v563, 0.0
    %v566 = vadd.f32 %v564, %v565
    %567 = vadd.xlane.f32.xlu0 %v566
    %v568 = vpop.xlane.xlu0 %567
    %v569 = vrot.slane %v568, 4
    %v570 = vadd.f32 %v568, %v569
    %v571 = vrot.slane %v570, 2
    %v572 = vadd.f32 %v570, %v571
    %v573 = vrot.slane %v572, 1
    %v574 = vadd.f32 %v572, %v573
    %s575 = vtos %v574
    %v576 = vlaneseq
    %v577 = vand.u32 %v576, 127
    %v578 = vld [vmem:[#allocation2] sm:$0x1]
    %vm579 = vcmp.eq.s32.totalorder %v577, 0
    %v580 = vstv %s526
    %v581 = vsel %vm579, %v580, 0.0
    %vm582 = vcmp.eq.s32.totalorder %v577, 1
    %v583 = vstv %s539
    %v584 = vsel %vm582, %v583, 0.0
    %v585 = vadd.f32 %v581, %v584
    %vm586 = vcmp.eq.s32.totalorder %v577, 2
    %v587 = vstv %s557
    %v588 = vsel %vm586, %v587, 0.0
    %v589 = vadd.f32 %v585, %v588
    %vm590 = vcmp.eq.s32.totalorder %v577, 3
    %v591 = vstv %s575
    %v592 = vsel %vm590, %v591, 0.0
    %v593 = vadd.f32 %v589, %v592
    %v594 = vadd.f32 %v578, %v593
    %595 = vst [vmem:[#allocation2] sm:$0x1] %v594
    // Predicated region
    $region22: #{tpu_custom_call.1} parent=1 // pred_check
      %p596 = pneg %p40
    $region23: #{tpu_custom_call.1} parent=1 // pred_check_branch
      %598 = sbr.rel (%p596) target = $region25
    $region24: #{tpu_custom_call.1} parent=1 // pred_region
      %v599 = vsel %vm579, 7.9719386e-05, 0.0625
      %v600 = vld [vmem:[#allocation2] sm:$0x1]
      %v601 = vmul.f32 %v600, %v599
      %602 = vst [vmem:[#allocation8] sm:$0x1] %v601
    $region25: #{tpu_custom_call.1} parent=1 // pred_fallthru
      _
    // Predicated region
    $region26: #{tpu_custom_call.1} parent=1 // pred_check
      _
    $region27: #{tpu_custom_call.1} parent=1 // pred_check_branch
      %604 = sbr.rel (0) target = $region29
    $region28: #{tpu_custom_call.1} parent=1 // pred_region
      %s606 = ssub.s32 16, 16
      %607 = vsyncadd [#allocation5], %s606
      %s609 = sshll.u32 [#allocation8], 4
      %s610 = int_to_ptr.vmem [resolvable:$true] %s609
      %612 = dma.vmem_to_hbm [thread:$0]  %s610, 16, %s2, [#allocation5]
    $region29: #{tpu_custom_call.1} parent=1 // pred_fallthru
      _
    // Predicated region
    $region30: #{tpu_custom_call.1} parent=1 // pred_check
      _
    $region31: #{tpu_custom_call.1} parent=1 // pred_check_branch
      %614 = sbr.rel (0) target = $region33
    $region32: #{tpu_custom_call.1} parent=1 // pred_region
      %615 = dma.done [#allocation5], 16
    $region33: #{tpu_custom_call.1} parent=1 // pred_fallthru
      _
    %616 = vsyncpa [#allocation4], 1
    %617 = vsyncpa [#allocation7], 1
    %618 = vsyncpa [#allocation5], 1

</llo_original>
